<compile_context>
chip_gen: v5e
topology: v5e:2x2
jax: 0.10.0
libtpu: 0.0.40
codegen_flags: <defaults>
</compile_context>

<pallas_src>
import jax
import jax.numpy as jnp
from jax.experimental import pallas as pl
from jax.experimental.pallas import tpu as pltpu


_LANE = 128
_SUBLANE = {4: 8, 2: 16, 1: 32}


def _round_up(x, m):
    return -(-x // m) * m


def _cdiv(a, b):
    return -(-a // b)


def _exchange_kernel(coef_ref, x0_ref, x1_ref, o_ref):
    # coef_ref: (br, 2) per-row coefficients in {0, 1, 2} (x dtype)
    # x*_ref:   (br, bc) feature tiles (rows = flattened (n, c), cols = (h, w))
    coef = coef_ref[...]
    a = coef[:, 0:1]            # coefficient for x[0]
    b = coef[:, 1:2]            # coefficient for x[1]
    o_ref[...] = (a * x0_ref[...] + b * x1_ref[...]).astype(o_ref.dtype)


def _pick_block(rows, cols, itemsize,
                target_bytes=4 * 1024 * 1024,
                footprint_budget=36 * 1024 * 1024):
    """Lane-dense (br, bc) block for the mem-bound select+add.

    VMEM accounting uses PADDED tile sizes: the lane dim pads to a multiple of
    128 and the (br, 2) coefficient block occupies full 128-lane tiles.
    Double-buffered footprint =
        3 data streams (x0, x1, out) * 2 bufs * pr * pc * itemsize
      + 1 coef stream               * 2 bufs * pr * 128 * itemsize
    """
    sub = _SUBLANE.get(itemsize, 8)

    def footprint(br, bc):
        p_r = _round_up(br, sub)
        p_c = _round_up(bc, _LANE)
        return 6 * p_r * p_c * itemsize + 2 * p_r * _LANE * itemsize

    def pick_rows(bc):
        p_c = _round_up(bc, _LANE)
        per_row = 6 * p_c * itemsize + 2 * _LANE * itemsize
        br = min(target_bytes // (p_c * itemsize),   # per-input block target
                 footprint_budget // per_row)        # total double-buffered budget
        br = int(max(1, br))
        if br >= rows:
            return rows                              # full extent is always legal
        return max(sub, (br // sub) * sub)           # sublane-tile multiple

    # 1) Prefer full-width rows: one contiguous HBM range per DMA.
    bc = cols
    br = pick_rows(bc)

    # 2) If even the smallest legal row-block blows the budget with full-width
    #    cols, split the lane dim (only legal when cols is 128-divisible).
    min_rows = min(rows, sub)
    if footprint(min_rows, bc) > footprint_budget and cols % _LANE == 0:
        n_lane_tiles = max(1, target_bytes // (min_rows * _LANE * itemsize))
        bc = min(cols, n_lane_tiles * _LANE)
        br = pick_rows(bc)

    # 3) v7x has two TensorCores: keep >=2 blocks along a "parallel" grid axis
    #    whenever there is enough data to make the split worthwhile.
    if (_cdiv(rows, br) == 1 and _cdiv(cols, bc) == 1
            and rows * cols * itemsize > (1 << 20)):
        if rows >= 2 * sub:
            br = max(sub, ((rows // 2) // sub) * sub)
        elif cols % _LANE == 0 and cols >= 2 * _LANE:
            bc = (cols // 2 // _LANE) * _LANE

    return br, bc


def exchange_forward(x, bn_weights, bn_threshold):
    """Pallas implementation of Exchange.forward(x, bn, bn_threshold).

    x:            list/tuple of two NCHW arrays (same shape/dtype)
    bn_weights:   list/tuple of two (C,) BN gamma vectors
    bn_threshold: scalar threshold
    """
    x0, x1 = x[0], x[1]
    w1, w2 = bn_weights

    if x0.shape != x1.shape:
        raise ValueError(f"Exchange: x[0] shape {x0.shape} != x[1] shape {x1.shape}")
    if x0.dtype != x1.dtype:
        raise ValueError(f"Exchange: x[0] dtype {x0.dtype} != x[1] dtype {x1.dtype}")

    n, c, h, w = x0.shape
    if w1.shape != (c,) or w2.shape != (c,):
        raise ValueError(
            f"Exchange: BN weights must have shape ({c},), got {w1.shape} / {w2.shape}")

    rows, cols = n * c, h * w
    itemsize = x0.dtype.itemsize

    # Per-channel masks -> per-(n, c) row coefficients (tiny; computed outside
    # the kernel).  where(m1, x0, x1) + where(m2, x1, x0)
    #   = (m1 + (1 - m2)) * x0 + ((1 - m1) + m2) * x1
    m1 = (jnp.abs(w1) >= bn_threshold).astype(jnp.float32)
    m2 = (jnp.abs(w2) >= bn_threshold).astype(jnp.float32)
    a = m1 + (1.0 - m2)                          # coefficient for x[0], in {0,1,2}
    b = (1.0 - m1) + m2                          # coefficient for x[1], in {0,1,2}
    coef_c = jnp.stack([a, b], axis=-1)          # (C, 2)
    coef = jnp.tile(coef_c, (n, 1)).astype(x0.dtype)   # (N*C, 2), exact in any dtype

    # Lane-dense 2D views of the feature maps (row-major reshape, no data move).
    x0_2d = x0.reshape(rows, cols)
    x1_2d = x1.reshape(rows, cols)

    br, bc = _pick_block(rows, cols, itemsize)
    grid = (_cdiv(rows, br), _cdiv(cols, bc))

    coef_spec = pl.BlockSpec((br, 2), lambda i, j: (i, 0))
    data_spec = pl.BlockSpec((br, bc), lambda i, j: (i, j))

    elems = rows * cols
    cost = pl.CostEstimate(
        flops=3 * elems,                                     # 2 mul + 1 add / elem
        transcendentals=0,
        bytes_accessed=3 * elems * itemsize + 2 * rows * itemsize,
    )

    out_2d = pl.pallas_call(
        _exchange_kernel,
        out_shape=jax.ShapeDtypeStruct((rows, cols), x0.dtype),
        grid=grid,
        in_specs=[coef_spec, data_spec, data_spec],
        out_specs=data_spec,
        compiler_params=pltpu.CompilerParams(
            dimension_semantics=("parallel", "parallel"),
            vmem_limit_bytes=48 * 1024 * 1024,
        ),
        cost_estimate=cost,
    )(coef, x0_2d, x1_2d)

    return out_2d.reshape(n, c, h, w)


class _BN:
    """Minimal stand-in for nn.BatchNorm2d exposing only .weight (gamma)."""

    def __init__(self, weight):
        self.weight = weight


class Exchange:
    """JAX/Pallas counterpart of the PyTorch Exchange module (no parameters)."""

    def __call__(self, x, bn, bn_threshold):
        return exchange_forward(x, (bn[0].weight, bn[1].weight), bn_threshold)


if __name__ == "__main__":
    key = jax.random.PRNGKey(0)
    k0, k1, k2, k3 = jax.random.split(key, 4)

    exch = Exchange()
    bn_threshold = 0.5

    # Primary check: 128-divisible lane dim (H*W = 256).
    n, c, h, w = 2, 4, 16, 16
    x0 = jax.random.normal(k0, (n, c, h, w), dtype=jnp.float32)
    x1 = jax.random.normal(k1, (n, c, h, w), dtype=jnp.float32)
    g1 = jax.random.normal(k2, (c,), dtype=jnp.float32)
    g2 = jax.random.normal(k3, (c,), dtype=jnp.float32)

    out = exch([x0, x1], [_BN(g1), _BN(g2)], bn_threshold)
    out = jax.block_until_ready(out)

    m1 = (jnp.abs(g1) >= bn_threshold)[None, :, None, None]
    m2 = (jnp.abs(g2) >= bn_threshold)[None, :, None, None]
    ref = jnp.where(m1, x0, x1) + jnp.where(m2, x1, x0)

    assert out.shape == ref.shape
    assert out.dtype == ref.dtype
    assert bool(jnp.array_equal(out, ref))

    # Secondary check: ragged lane dim (7x7 = 49) and rows < sublane tile.
    n2, c2, h2, w2 = 1, 3, 7, 7
    y0 = jax.random.normal(k0, (n2, c2, h2, w2), dtype=jnp.float32)
    y1 = jax.random.normal(k1, (n2, c2, h2, w2), dtype=jnp.float32)
    p1 = jax.random.normal(k2, (c2,), dtype=jnp.float32)
    p2 = jax.random.normal(k3, (c2,), dtype=jnp.float32)

    out2 = jax.block_until_ready(exch([y0, y1], [_BN(p1), _BN(p2)], bn_threshold))
    mm1 = (jnp.abs(p1) >= bn_threshold)[None, :, None, None]
    mm2 = (jnp.abs(p2) >= bn_threshold)[None, :, None, None]
    ref2 = jnp.where(mm1, y0, y1) + jnp.where(mm2, y1, y0)
    assert bool(jnp.array_equal(out2, ref2))

    print("KERNEL_OK")
</pallas_src>

<mosaic_0001>
module attributes {stable_mosaic.version = 11 : i64} {
  func.func @_exchange_kernel(%arg0: i32, %arg1: i32, %arg2: memref<8x2xf32, #tpu.memory_space<vmem>>, %arg3: memref<8x256xf32, #tpu.memory_space<vmem>>, %arg4: memref<8x256xf32, #tpu.memory_space<vmem>>, %arg5: memref<8x256xf32, #tpu.memory_space<vmem>>) attributes {dimension_semantics = [#tpu.dimension_semantics<parallel>, #tpu.dimension_semantics<parallel>], iteration_bounds = array<i64: 1, 1>, scalar_prefetch = 0 : i64, scratch_operands = 0 : i64, tpu.core_type = #tpu.core_type<tc>, window_params = [{transform_indices = @transform_0, window_bounds = array<i64: 8, 2>}, {transform_indices = @transform_1, window_bounds = array<i64: 8, 256>}, {transform_indices = @transform_2, window_bounds = array<i64: 8, 256>}, {transform_indices = @transform_3, window_bounds = array<i64: 8, 256>}]} {
    %c0 = arith.constant 0 : index
    %c0_0 = arith.constant 0 : index
    %0 = vector.load %arg2[%c0, %c0_0] : memref<8x2xf32, #tpu.memory_space<vmem>>, vector<8x2xf32>
    %1 = vector.extract_strided_slice %0 {offsets = [0, 0], sizes = [8, 1], strides = [1, 1]} : vector<8x2xf32> to vector<8x1xf32>
    %2 = vector.extract_strided_slice %0 {offsets = [0, 1], sizes = [8, 1], strides = [1, 1]} : vector<8x2xf32> to vector<8x1xf32>
    %c0_1 = arith.constant 0 : index
    %c0_2 = arith.constant 0 : index
    %3 = vector.load %arg3[%c0_1, %c0_2] : memref<8x256xf32, #tpu.memory_space<vmem>>, vector<8x256xf32>
    %4 = vector.broadcast %1 : vector<8x1xf32> to vector<8x256xf32>
    %5 = arith.mulf %4, %3 : vector<8x256xf32>
    %c0_3 = arith.constant 0 : index
    %c0_4 = arith.constant 0 : index
    %6 = vector.load %arg4[%c0_3, %c0_4] : memref<8x256xf32, #tpu.memory_space<vmem>>, vector<8x256xf32>
    %7 = vector.broadcast %2 : vector<8x1xf32> to vector<8x256xf32>
    %8 = arith.mulf %7, %6 : vector<8x256xf32>
    %9 = arith.addf %5, %8 : vector<8x256xf32>
    %c0_5 = arith.constant 0 : index
    %c0_6 = arith.constant 0 : index
    %10 = vector.load %arg5[%c0_5, %c0_6] : memref<8x256xf32, #tpu.memory_space<vmem>>, vector<8x256xf32>
    tpu.vector_store %arg5[%c0_5, %c0_6], %9 {strides = array<i32>} : memref<8x256xf32, #tpu.memory_space<vmem>>, vector<8x256xf32>,
    return
  }
  func.func @transform_0(%arg0: i32, %arg1: i32) -> (i32, i32) {
    %c0_i32 = arith.constant 0 : i32
    %c0_i32_0 = arith.constant 0 : i32
    return %arg0, %c0_i32 : i32, i32
  }
  func.func @transform_1(%arg0: i32, %arg1: i32) -> (i32, i32) {
    %c0_i32 = arith.constant 0 : i32
    return %arg0, %arg1 : i32, i32
  }
  func.func @transform_2(%arg0: i32, %arg1: i32) -> (i32, i32) {
    %c0_i32 = arith.constant 0 : i32
    return %arg0, %arg1 : i32, i32
  }
  func.func @transform_3(%arg0: i32, %arg1: i32) -> (i32, i32) {
    %c0_i32 = arith.constant 0 : i32
    return %arg0, %arg1 : i32, i32
  }
}

</mosaic_0001>

<llo_original>
// kernel: tpu_custom_call.1
$region0: #{tpu_custom_call.1}
  #allocation0 [shape = 'u32[]', space=smem, size = 0x4, offset = 0x4, fixed_abs, tag = 'smem constant byte address 0x4 - core index']
  #allocation1 [shape = 'u32[72,128]{1,0:T(1,128)}', space=vmem, size = 0x9000, scoped, tag = 'internal scratch']
  %s0 = inlined_call_operand.vmem [shape: f32[8,2], index: 0, kind: input, shape index: {}]
  %s1 = inlined_call_operand.hbm [shape: f32[8,256], index: 1, kind: input, shape index: {}]
  %s2 = inlined_call_operand.hbm [shape: f32[8,256], index: 2, kind: input, shape index: {}]
  %s3 = inlined_call_operand.hbm [shape: f32[8,256], index: 3, kind: output, shape index: {}]
  %s4 = sld [smem:[#allocation0]]
  $region30: #{tpu_custom_call.1} parent=0
    _
  %s6 = ssub.s32 1, %s4
  %s7 = scalar_select 0, %s6, %s4
  $region1: #{tpu_custom_call.1} parent=0
    #allocation2 [shape = 'u8[8192]{0}', space=vmem, size = 0x2000, scoped, tag = 'input window, operand 1, single buffered']
    #allocation3 [shape = 's32[1]{0}', space=sflag, size = 0x4, scoped, tag = 'scoped memory for tpu_custom_call.1']
    #allocation4 [shape = 's32[1]{0}', space=sflag, size = 0x4, scoped, tag = 'scoped memory for tpu_custom_call.1']
    #allocation5 [shape = 'u8[8192]{0}', space=vmem, size = 0x2000, scoped, tag = 'input window, operand 2, single buffered']
    #allocation6 [shape = 's32[1]{0}', space=sflag, size = 0x4, scoped, tag = 'scoped memory for tpu_custom_call.1']
    #allocation7 [shape = 'u8[8192]{0}', space=vmem, size = 0x2000, scoped, tag = 'output window, operand 0, single buffered']
    %8 = vsyncpa [#allocation3], 0
    %9 = vsyncpa [#allocation6], 0
    %10 = vsyncpa [#allocation4], 0
    // Predicated region
    $region2: #{tpu_custom_call.1} parent=1 // pred_check
      _
    $region3: #{tpu_custom_call.1} parent=1 // pred_check_branch
      %12 = sbr.rel (0) target = $region5
    $region4: #{tpu_custom_call.1} parent=1 // pred_region
      _
    $region5: #{tpu_custom_call.1} parent=1 // pred_fallthru
      _
    // Predicated region
    $region6: #{tpu_custom_call.1} parent=1 // pred_check
      _
    $region7: #{tpu_custom_call.1} parent=1 // pred_check_branch
      %14 = sbr.rel (0) target = $region9
    $region8: #{tpu_custom_call.1} parent=1 // pred_region
      %16 = vsyncadd [#allocation3], 0
      %s18 = sshll.u32 %s1, 4
      %s19 = int_to_ptr.hbm [resolvable:$true] %s18
      %s20 = sshll.u32 [#allocation2], 4
      %s21 = int_to_ptr.vmem [resolvable:$true] %s20
      %23 = dma.hbm_to_vmem [thread:$0]  %s19, 256, %s21, [#allocation3]
    $region9: #{tpu_custom_call.1} parent=1 // pred_fallthru
      _
    // Predicated region
    $region10: #{tpu_custom_call.1} parent=1 // pred_check
      _
    $region11: #{tpu_custom_call.1} parent=1 // pred_check_branch
      %25 = sbr.rel (0) target = $region13
    $region12: #{tpu_custom_call.1} parent=1 // pred_region
      %27 = vsyncadd [#allocation6], 0
      %s29 = sshll.u32 %s2, 4
      %s30 = int_to_ptr.hbm [resolvable:$true] %s29
      %s31 = sshll.u32 [#allocation5], 4
      %s32 = int_to_ptr.vmem [resolvable:$true] %s31
      %34 = dma.hbm_to_vmem [thread:$0]  %s30, 256, %s32, [#allocation6]
    $region13: #{tpu_custom_call.1} parent=1 // pred_fallthru
      _
    // Predicated region
    $region14: #{tpu_custom_call.1} parent=1 // pred_check
      _
    $region15: #{tpu_custom_call.1} parent=1 // pred_check_branch
      %36 = sbr.rel (0) target = $region17
    $region16: #{tpu_custom_call.1} parent=1 // pred_region
      %38 = dma.done [#allocation3], 256
    $region17: #{tpu_custom_call.1} parent=1 // pred_fallthru
      _
    // Predicated region
    $region18: #{tpu_custom_call.1} parent=1 // pred_check
      _
    $region19: #{tpu_custom_call.1} parent=1 // pred_check_branch
      %40 = sbr.rel (0) target = $region21
    $region20: #{tpu_custom_call.1} parent=1 // pred_region
      %42 = dma.done [#allocation6], 256
    $region21: #{tpu_custom_call.1} parent=1 // pred_fallthru
      _
    %v43 = vld [vmem:[%s0] sm:$0xff]
    %v44 = vld [vmem:[#allocation2] sm:$0xff]
    %v45 = vld [vmem:[#allocation2 + $0x8] sm:$0xff]
    %47 = vset.pattern.permute.xlu0 0
    %48 = vperm.xlu0 %47, %v43
    %v49 = vpop.permute.xlu0 %48
    %v51 = vmul.f32 %v49, %v44
    %v52 = vmul.f32 %v49, %v45
    %v53 = vld [vmem:[#allocation5] sm:$0xff]
    %v54 = vld [vmem:[#allocation5 + $0x8] sm:$0xff]
    %55 = vset.pattern.permute.xlu0 1
    %56 = vperm.xlu0 %55, %v43
    %v57 = vpop.permute.xlu0 %56
    %v59 = vmul.f32 %v57, %v53
    %v60 = vmul.f32 %v57, %v54
    %v61 = vadd.f32 %v51, %v59
    %v62 = vadd.f32 %v52, %v60
    %63 = vst [vmem:[#allocation7] sm:$0xff] %v61
    %64 = vst [vmem:[#allocation7 + $0x8] sm:$0xff] %v62
    // Predicated region
    $region22: #{tpu_custom_call.1} parent=1 // pred_check
      _
    $region23: #{tpu_custom_call.1} parent=1 // pred_check_branch
      %66 = sbr.rel (0) target = $region25
    $region24: #{tpu_custom_call.1} parent=1 // pred_region
      %68 = vsyncadd [#allocation4], 0
      %s70 = sshll.u32 [#allocation7], 4
      %s71 = int_to_ptr.vmem [resolvable:$true] %s70
      %s72 = sshll.u32 %s3, 4
      %s73 = int_to_ptr.hbm [resolvable:$true] %s72
      %75 = dma.vmem_to_hbm [thread:$0]  %s71, 256, %s73, [#allocation4]
    $region25: #{tpu_custom_call.1} parent=1 // pred_fallthru
      _
    // Predicated region
    $region26: #{tpu_custom_call.1} parent=1 // pred_check
      _
    $region27: #{tpu_custom_call.1} parent=1 // pred_check_branch
      %77 = sbr.rel (0) target = $region29
    $region28: #{tpu_custom_call.1} parent=1 // pred_region
      %79 = dma.done [#allocation4], 256
    $region29: #{tpu_custom_call.1} parent=1 // pred_fallthru
      _
    %80 = vsyncpa [#allocation3], 1
    %81 = vsyncpa [#allocation6], 1
    %82 = vsyncpa [#allocation4], 1

</llo_original>
